<compile_context>
chip_gen: v7x
topology: tpu7x:2x2x1
jax: 0.10.0
libtpu: 0.0.40
codegen_flags: <defaults>
</compile_context>

<pallas_src>
import functools

import jax
import jax.numpy as jnp
import numpy as np
from jax.experimental import pallas as pl
from jax.experimental.pallas import tpu as pltpu


# ----------------------------------------------------------------------------
# Kernel
# ----------------------------------------------------------------------------
def odd_layer_kernel(a_ref, w_ref, out_ref, acc_ref, *, clip_tanh):
    """One (tb, te) output tile, accumulated over the K (reduction) grid axis.

    a_ref  : (tb, tk)  concatenated [x | llr] activation tile
    w_ref  : (tk, te)  pre-masked, stacked [W_odd ; W_llr] weight tile
    out_ref: (tb, te)  float32 output tile
    acc_ref: (tb, te)  float32 VMEM accumulator (persists across the K axis)
    """
    @pl.when(pl.program_id(2) == 0)
    def _():
        acc_ref[...] = jnp.zeros_like(acc_ref)

    acc_ref[...] += jnp.dot(a_ref[...], w_ref[...],
                            preferred_element_type=jnp.float32)

    @pl.when(pl.program_id(2) == pl.num_programs(2) - 1)
    def _():
        acc = jnp.clip(acc_ref[...], -clip_tanh, clip_tanh)
        out_ref[...] = jnp.tanh(0.5 * acc).astype(out_ref.dtype)


# ----------------------------------------------------------------------------
# Helpers
# ----------------------------------------------------------------------------
def _round_up(v, m):
    return ((v + m - 1) // m) * m


def _pad2(a, rows, cols):
    return jnp.pad(a, ((0, rows - a.shape[0]), (0, cols - a.shape[1])))


def _pick_tiles(B, K, Eout, tb, te, tk):
    if tb is None:
        tb = min(256, _round_up(B, 8))
    if te is None:
        te = min(256, _round_up(Eout, 128))
    if tk is None:
        tk = min(2048, _round_up(K, 128))
    return tb, te, tk


def prepare_odd_layer_weights(odd_weights, llr_weights, mask_odd, mask_llr,
                              llr_mask_only=False, compute_dtype=jnp.float32):
    """Pre-mask and stack the two weight matrices once (hoisted out of forward)."""
    wo = (mask_odd * odd_weights).astype(compute_dtype)           # (Ein, Eout)
    if llr_mask_only:
        # matmul(llr, mask) == matmul(llr, mask * ones): no ones matrix needed.
        wl = mask_llr.astype(compute_dtype)                       # (N, Eout)
    else:
        wl = (mask_llr * llr_weights).astype(compute_dtype)       # (N, Eout)
    return jnp.concatenate([wo, wl], axis=0)                      # (Ein+N, Eout)


def _odd_layer_padded_call(a_pad, w_pad, *, clip_tanh, tb, te, tk):
    """pallas_call on already-padded operands.  a_pad: (Bp, Kp), w_pad: (Kp, Eop)."""
    Bp, Kp = a_pad.shape
    Eop = w_pad.shape[1]
    grid = (Bp // tb, Eop // te, Kp // tk)

    itemsize = jnp.dtype(a_pad.dtype).itemsize
    # 2x double-buffered streamed input blocks + double-buffered out + f32 accumulator.
    block_bytes = 2 * (tb * tk + tk * te) * itemsize + 2 * tb * te * 4 + tb * te * 4
    vmem_limit = int(min(100 * 1024 * 1024, max(16 * 1024 * 1024, 2 * block_bytes)))

    return pl.pallas_call(
        functools.partial(odd_layer_kernel, clip_tanh=clip_tanh),
        out_shape=jax.ShapeDtypeStruct((Bp, Eop), jnp.float32),
        grid=grid,
        in_specs=[
            pl.BlockSpec((tb, tk), lambda i, j, k: (i, k)),   # [x | llr] batch tile
            pl.BlockSpec((tk, te), lambda i, j, k: (k, j)),   # stacked masked weights
        ],
        out_specs=pl.BlockSpec((tb, te), lambda i, j, k: (i, j)),
        scratch_shapes=[pltpu.VMEM((tb, te), jnp.float32)],
        compiler_params=pltpu.CompilerParams(
            dimension_semantics=("parallel", "parallel", "arbitrary"),
            vmem_limit_bytes=vmem_limit),
    )(a_pad, w_pad)


def make_odd_layer(odd_weights, llr_weights, mask_odd, mask_llr, clip_tanh,
                   llr_mask_only=False, compute_dtype=jnp.float32,
                   tb=None, te=None, tk=None):
    """Prepare (mask, stack, pad, cast) the weights ONCE and return a jitted
    forward(x, llr) that reuses the prepared weight slab across BP iterations."""
    Ein, Eout = odd_weights.shape
    N = llr_weights.shape[0]
    K = Ein + N
    _, te_, tk_ = _pick_tiles(8, K, Eout, None, te, tk)

    w_stack = prepare_odd_layer_weights(odd_weights, llr_weights, mask_odd,
                                        mask_llr, llr_mask_only, compute_dtype)
    Kp = _round_up(K, tk_)
    Eop = _round_up(Eout, te_)
    w_pad = jax.block_until_ready(_pad2(w_stack, Kp, Eop))   # materialized once

    @functools.partial(jax.jit, static_argnames=("tb_",))
    def _fwd(x, llr, w, tb_):
        B = x.shape[0]
        a = jnp.concatenate(
            [x.astype(compute_dtype), llr.astype(compute_dtype)], axis=1)
        a_pad = _pad2(a, _round_up(B, tb_), Kp)
        out_p = _odd_layer_padded_call(a_pad, w, clip_tanh=clip_tanh,
                                       tb=tb_, te=te_, tk=tk_)
        return out_p[:B, :Eout]

    def forward(x, llr):
        B = x.shape[0]
        tb_ = tb if tb is not None else min(256, _round_up(B, 8))
        return _fwd(x, llr, w_pad, tb_)

    return forward


def odd_layer_forward(x, llr, odd_weights, llr_weights, mask_odd, mask_llr,
                      clip_tanh, llr_mask_only=False, **kw):
    """One-shot convenience wrapper (prefer make_odd_layer for repeated calls)."""
    return make_odd_layer(odd_weights, llr_weights, mask_odd, mask_llr,
                          clip_tanh, llr_mask_only, **kw)(x, llr)


# ----------------------------------------------------------------------------
# Reference / test scaffolding
# ----------------------------------------------------------------------------
def init_bp_masks(code_pcm):
    """Standard neural-BP masks for the odd (variable->check) layer."""
    M, Nbits = code_pcm.shape
    edges = [(c, v) for c in range(M) for v in range(Nbits) if code_pcm[c, v] != 0]
    E = len(edges)
    w_odd2even_mask = np.zeros((E, E), np.float32)
    w_skip_mask = np.zeros((Nbits, E), np.float32)
    for j, (c, v) in enumerate(edges):
        w_skip_mask[v, j] = 1.0
        for i, (c2, v2) in enumerate(edges):
            if v2 == v and c2 != c:
                w_odd2even_mask[i, j] = 1.0
    return w_odd2even_mask, w_skip_mask, E


def reference_forward(x, llr, odd_weights, llr_weights, mask_odd, mask_llr,
                      clip_tanh, llr_mask_only=False):
    """Pure-JAX re-implementation of the exact PyTorch OddLayer.forward."""
    hp = jax.lax.Precision.HIGHEST
    a = jnp.dot(x, mask_odd * odd_weights, precision=hp)
    if llr_mask_only:
        b = jnp.dot(llr, mask_llr, precision=hp)
    else:
        b = jnp.dot(llr, mask_llr * llr_weights, precision=hp)
    return jnp.tanh(0.5 * jnp.clip(a + b, -clip_tanh, clip_tanh))


if __name__ == "__main__":
    # Small synthetic linear code: parity-check matrix (M=4 checks, N=8 bits).
    code_pcm = np.array(
        [
            [1, 1, 0, 1, 1, 0, 0, 0],
            [0, 1, 1, 0, 1, 1, 0, 0],
            [0, 0, 1, 1, 0, 1, 1, 0],
            [1, 0, 0, 0, 0, 1, 1, 1],
        ],
        dtype=np.float32,
    )
    Nbits = code_pcm.shape[1]          # input_output_layer_size
    clip_tanh = 10.0
    batch = 2

    mask_odd_np, mask_llr_np, neurons = init_bp_masks(code_pcm)  # E = 16 edges
    mask_odd = jnp.asarray(mask_odd_np)
    mask_llr = jnp.asarray(mask_llr_np)

    key = jax.random.PRNGKey(0)
    k1, k2, k3, k4 = jax.random.split(key, 4)
    odd_weights = jax.random.normal(k1, (neurons, neurons), dtype=jnp.float32)
    llr_weights = jax.random.normal(k2, (Nbits, neurons), dtype=jnp.float32)
    x = jax.random.normal(k3, (batch, neurons), dtype=jnp.float32)        # v2c messages
    llr = 2.0 * jax.random.normal(k4, (batch, Nbits), dtype=jnp.float32)  # channel LLRs

    # Default path (masked + learned LLR weights); weights prepared once, reused.
    layer = make_odd_layer(odd_weights, llr_weights, mask_odd, mask_llr,
                           clip_tanh, llr_mask_only=False)
    out = jax.block_until_ready(layer(x, llr))
    ref = reference_forward(x, llr, odd_weights, llr_weights, mask_odd,
                            mask_llr, clip_tanh, llr_mask_only=False)
    assert out.shape == (batch, neurons)
    np.testing.assert_allclose(np.asarray(out), np.asarray(ref),
                               rtol=1e-4, atol=1e-4)
    # Second call reuses the compiled kernel + prepared weights.
    out_again = jax.block_until_ready(layer(x, llr))
    np.testing.assert_allclose(np.asarray(out_again), np.asarray(ref),
                               rtol=1e-4, atol=1e-4)

    # llr_mask_only=True path (no ones matrix materialized).
    layer_mask_only = make_odd_layer(odd_weights, llr_weights, mask_odd, mask_llr,
                                     clip_tanh, llr_mask_only=True)
    out2 = jax.block_until_ready(layer_mask_only(x, llr))
    ref2 = reference_forward(x, llr, odd_weights, llr_weights, mask_odd,
                             mask_llr, clip_tanh, llr_mask_only=True)
    np.testing.assert_allclose(np.asarray(out2), np.asarray(ref2),
                               rtol=1e-4, atol=1e-4)

    # bf16 compute path (v6e/v7x native MXU rate), f32 accumulation; loose tolerance.
    layer_bf16 = make_odd_layer(odd_weights, llr_weights, mask_odd, mask_llr,
                                clip_tanh, llr_mask_only=False,
                                compute_dtype=jnp.bfloat16)
    out3 = jax.block_until_ready(layer_bf16(x, llr))
    np.testing.assert_allclose(np.asarray(out3), np.asarray(ref),
                               rtol=5e-2, atol=5e-2)

    print("KERNEL_OK")
</pallas_src>

<mosaic_0001>
module attributes {stable_mosaic.version = 11 : i64} {
  func.func @odd_layer_kernel(%arg0: i32, %arg1: i32, %arg2: i32, %arg3: memref<8x128xf32, #tpu.memory_space<vmem>>, %arg4: memref<128x128xf32, #tpu.memory_space<vmem>>, %arg5: memref<8x128xf32, #tpu.memory_space<vmem>>, %arg6: memref<8x128xf32, #tpu.memory_space<vmem>>) attributes {dimension_semantics = [#tpu.dimension_semantics<parallel>, #tpu.dimension_semantics<parallel>, #tpu.dimension_semantics<arbitrary>], iteration_bounds = array<i64: 1, 1, 1>, scalar_prefetch = 0 : i64, scratch_operands = 1 : i64, tpu.core_type = #tpu.core_type<tc>, window_params = [{transform_indices = @transform_0, window_bounds = array<i64: 8, 128>}, {transform_indices = @transform_1, window_bounds = array<i64: 128, 128>}, {transform_indices = @transform_2, window_bounds = array<i64: 8, 128>}]} {
    %c0_i32 = arith.constant 0 : i32
    %0 = arith.cmpi eq, %arg2, %c0_i32 : i32
    %1 = arith.extui %0 : i1 to i32
    %c0_i32_0 = arith.constant 0 : i32
    %2 = arith.cmpi ne, %1, %c0_i32_0 : i32
    scf.if %2 {
      %cst_10 = arith.constant 0.000000e+00 : f32
      %12 = vector.broadcast %cst_10 : f32 to vector<8x128xf32>
      %c0_11 = arith.constant 0 : index
      %c0_12 = arith.constant 0 : index
      %13 = vector.load %arg6[%c0_11, %c0_12] : memref<8x128xf32, #tpu.memory_space<vmem>>, vector<8x128xf32>
      tpu.vector_store %arg6[%c0_11, %c0_12], %12 {strides = array<i32>} : memref<8x128xf32, #tpu.memory_space<vmem>>, vector<8x128xf32>,
    } else {
    }
    %c0 = arith.constant 0 : index
    %c0_1 = arith.constant 0 : index
    %3 = vector.load %arg6[%c0, %c0_1] : memref<8x128xf32, #tpu.memory_space<vmem>>, vector<8x128xf32>
    %c0_2 = arith.constant 0 : index
    %c0_3 = arith.constant 0 : index
    %4 = vector.load %arg3[%c0_2, %c0_3] : memref<8x128xf32, #tpu.memory_space<vmem>>, vector<8x128xf32>
    %c0_4 = arith.constant 0 : index
    %c0_5 = arith.constant 0 : index
    %5 = vector.load %arg4[%c0_4, %c0_5] : memref<128x128xf32, #tpu.memory_space<vmem>>, vector<128x128xf32>
    %cst = arith.constant dense<0.000000e+00> : vector<8x128xf32>
    %6 = tpu.matmul %4, %5, %cst {dimension_numbers = #tpu.dot_dimension_numbers<[1], [0], [0], [1], [0, 0, 1, 1], [], []>} : vector<8x128xf32>, vector<128x128xf32>, vector<8x128xf32> -> vector<8x128xf32>
    %7 = arith.addf %3, %6 : vector<8x128xf32>
    %c0_6 = arith.constant 0 : index
    %c0_7 = arith.constant 0 : index
    %8 = vector.load %arg6[%c0_6, %c0_7] : memref<8x128xf32, #tpu.memory_space<vmem>>, vector<8x128xf32>
    tpu.vector_store %arg6[%c0_6, %c0_7], %7 {strides = array<i32>} : memref<8x128xf32, #tpu.memory_space<vmem>>, vector<8x128xf32>,
    %c0_i32_8 = arith.constant 0 : i32
    %9 = arith.cmpi eq, %arg2, %c0_i32_8 : i32
    %10 = arith.extui %9 : i1 to i32
    %c0_i32_9 = arith.constant 0 : i32
    %11 = arith.cmpi ne, %10, %c0_i32_9 : i32
    scf.if %11 {
      %c0_10 = arith.constant 0 : index
      %c0_11 = arith.constant 0 : index
      %12 = vector.load %arg6[%c0_10, %c0_11] : memref<8x128xf32, #tpu.memory_space<vmem>>, vector<8x128xf32>
      %cst_12 = arith.constant -1.000000e+01 : f32
      %cst_13 = arith.constant 1.000000e+01 : f32
      %13 = vector.broadcast %cst_12 : f32 to vector<8x128xf32>
      %14 = arith.maximumf %13, %12 : vector<8x128xf32>
      %15 = vector.broadcast %cst_13 : f32 to vector<8x128xf32>
      %16 = arith.minimumf %15, %14 : vector<8x128xf32>
      %cst_14 = arith.constant 5.000000e-01 : f32
      %17 = vector.broadcast %cst_14 : f32 to vector<8x128xf32>
      %18 = arith.mulf %17, %16 : vector<8x128xf32>
      %19 = math.tanh %18 : vector<8x128xf32>
      %c0_15 = arith.constant 0 : index
      %c0_16 = arith.constant 0 : index
      %20 = vector.load %arg5[%c0_15, %c0_16] : memref<8x128xf32, #tpu.memory_space<vmem>>, vector<8x128xf32>
      tpu.vector_store %arg5[%c0_15, %c0_16], %19 {strides = array<i32>} : memref<8x128xf32, #tpu.memory_space<vmem>>, vector<8x128xf32>,
    } else {
    }
    return
  }
  func.func @transform_0(%arg0: i32, %arg1: i32, %arg2: i32) -> (i32, i32) {
    %c0_i32 = arith.constant 0 : i32
    return %arg0, %arg2 : i32, i32
  }
  func.func @transform_1(%arg0: i32, %arg1: i32, %arg2: i32) -> (i32, i32) {
    %c0_i32 = arith.constant 0 : i32
    return %arg2, %arg1 : i32, i32
  }
  func.func @transform_2(%arg0: i32, %arg1: i32, %arg2: i32) -> (i32, i32) {
    %c0_i32 = arith.constant 0 : i32
    return %arg0, %arg1 : i32, i32
  }
}

</mosaic_0001>

<llo_original>
// kernel: _fwd.1
$region0: #{_fwd.1}
  #allocation0 [shape = 'u32[]', space=smem, size = 0x4, offset = 0x4, fixed_abs, tag = 'smem constant byte address 0x4 - core index']
  #allocation1 [shape = 'u32[144,128]{1,0:T(1,128)}', space=vmem, size = 0x12000, scoped, tag = 'internal scratch']
  #allocation2 [shape = 'f32[8,128]{1,0:T(8,128)}', space=vmem, size = 0x1000, scoped, tag = 'scratch operand']
  %s0 = inlined_call_operand.vmem [shape: f32[8,128], index: 0, kind: input, shape index: {}]
  %s1 = inlined_call_operand.hbm [shape: f32[128,128], index: 1, kind: input, shape index: {}]
  %s2 = inlined_call_operand.vmem [shape: f32[8,128], index: 2, kind: output, shape index: {}]
  %s3 = sld [smem:[#allocation0]]
  $region30: #{_fwd.1} parent=0
    _
  %s5 = ssub.s32 1, %s3
  %s6 = scalar_select 0, %s5, %s3
  $region1: #{_fwd.1} parent=0
    #allocation3 [shape = 'u8[65536]{0}', space=vmem, size = 0x10000, scoped, tag = 'input window, operand 1, single buffered']
    #allocation4 [shape = 's32[1]{0}', space=sflag, size = 0x4, scoped, tag = 'scoped memory for _fwd.1']
    %7 = vsyncpa [#allocation4], 0
    // Predicated region
    $region2: #{_fwd.1} parent=1 // pred_check
      _
    $region3: #{_fwd.1} parent=1 // pred_check_branch
      %9 = sbr.rel (0) target = $region5
    $region4: #{_fwd.1} parent=1 // pred_region
      _
    $region5: #{_fwd.1} parent=1 // pred_fallthru
      _
    // Predicated region
    $region6: #{_fwd.1} parent=1 // pred_check
      _
    $region7: #{_fwd.1} parent=1 // pred_check_branch
      %11 = sbr.rel (0) target = $region9
    $region8: #{_fwd.1} parent=1 // pred_region
      %s13 = ssub.s32 2048, 2048
      %14 = vsyncadd [#allocation4], %s13
      %s15 = sshll.u32 [#allocation3], 4
      %s16 = int_to_ptr.vmem [resolvable:$true] %s15
      %21 = dma.hbm_to_vmem [thread:$0]  %s1, 2048, %s16, [#allocation4], 128, 128, 8
    $region9: #{_fwd.1} parent=1 // pred_fallthru
      _
    // Predicated region
    $region10: #{_fwd.1} parent=1 // pred_check
      _
    $region11: #{_fwd.1} parent=1 // pred_check_branch
      %23 = sbr.rel (0) target = $region13
    $region12: #{_fwd.1} parent=1 // pred_region
      %24 = dma.done [#allocation4], 2048
    $region13: #{_fwd.1} parent=1 // pred_fallthru
      _
    %p25 = scmp.eq.s32.totalorder 0, 0
    // Predicated region
    $region14: #{_fwd.1} parent=1 // pred_check
      %p26 = pneg %p25
    $region15: #{_fwd.1} parent=1 // pred_check_branch
      %28 = sbr.rel (%p26) target = $region17
    $region16: #{_fwd.1} parent=1 // pred_region
      %29 = vst [vmem:[#allocation2] sm:$0xff] 0.0
    $region17: #{_fwd.1} parent=1 // pred_fallthru
      _
    %v30 = vld [vmem:[#allocation2] sm:$0xff]
    %v31 = vld [vmem:[%s0] sm:$0xff]
    %v32 = vld [vmem:[#allocation3] sm:$0xff]
    %v33 = vld [vmem:[#allocation3 + $0x8] sm:$0xff]
    %v34 = vld [vmem:[#allocation3 + $0x10] sm:$0xff]
    %v35 = vld [vmem:[#allocation3 + $0x18] sm:$0xff]
    %v36 = vld [vmem:[#allocation3 + $0x20] sm:$0xff]
    %v37 = vld [vmem:[#allocation3 + $0x28] sm:$0xff]
    %v38 = vld [vmem:[#allocation3 + $0x30] sm:$0xff]
    %v39 = vld [vmem:[#allocation3 + $0x38] sm:$0xff]
    %v40 = vld [vmem:[#allocation3 + $0x40] sm:$0xff]
    %v41 = vld [vmem:[#allocation3 + $0x48] sm:$0xff]
    %v42 = vld [vmem:[#allocation3 + $0x50] sm:$0xff]
    %v43 = vld [vmem:[#allocation3 + $0x58] sm:$0xff]
    %v44 = vld [vmem:[#allocation3 + $0x60] sm:$0xff]
    %v45 = vld [vmem:[#allocation3 + $0x68] sm:$0xff]
    %v46 = vld [vmem:[#allocation3 + $0x70] sm:$0xff]
    %v47 = vld [vmem:[#allocation3 + $0x78] sm:$0xff]
    %48 = vmatprep.subr.mxu0 0.0
    %49 = vmatpush1.msra.mxu0 %v32
    %50 = vmatprep.subr.mxu0 0.0
    %51 = vmatpush1.msra.mxu0 %v33
    %52 = vmatprep.subr.mxu0 0.0
    %53 = vmatpush1.msra.mxu0 %v34
    %54 = vmatprep.subr.mxu0 0.0
    %55 = vmatpush1.msra.mxu0 %v35
    %56 = vmatprep.subr.mxu0 0.0
    %57 = vmatpush1.msra.mxu0 %v36
    %58 = vmatprep.subr.mxu0 0.0
    %59 = vmatpush1.msra.mxu0 %v37
    %60 = vmatprep.subr.mxu0 0.0
    %61 = vmatpush1.msra.mxu0 %v38
    %62 = vmatprep.subr.mxu0 0.0
    %63 = vmatpush1.msra.mxu0 %v39
    %64 = vmatprep.subr.mxu0 0.0
    %65 = vmatpush1.msra.mxu0 %v40
    %66 = vmatprep.subr.mxu0 0.0
    %67 = vmatpush1.msra.mxu0 %v41
    %68 = vmatprep.subr.mxu0 0.0
    %69 = vmatpush1.msra.mxu0 %v42
    %70 = vmatprep.subr.mxu0 0.0
    %71 = vmatpush1.msra.mxu0 %v43
    %72 = vmatprep.subr.mxu0 0.0
    %73 = vmatpush1.msra.mxu0 %v44
    %74 = vmatprep.subr.mxu0 0.0
    %75 = vmatpush1.msra.mxu0 %v45
    %76 = vmatprep.subr.mxu0 0.0
    %77 = vmatpush1.msra.mxu0 %v46
    %78 = vmatprep.subr.mxu0 0.0
    %79 = vmatpush1.msra.mxu0 %v47
    %80 = vmatprep.subr.mxu0 0.0
    %81 = vmatpush1.msra.mxu0 0.0
    %82 = vmatprep.subr.mxu0 0.0
    %83 = vmatpush1.msra.mxu0 0.0
    %84 = vmatprep.subr.mxu0 0.0
    %85 = vmatpush1.msra.mxu0 0.0
    %86 = vmatprep.subr.mxu0 0.0
    %87 = vmatpush1.msra.mxu0 0.0
    %88 = vmatprep.subr.mxu0 0.0
    %89 = vmatpush1.msra.mxu0 0.0
    %90 = vmatprep.subr.mxu0 0.0
    %91 = vmatpush1.msra.mxu0 0.0
    %92 = vmatprep.subr.mxu0 0.0
    %93 = vmatpush1.msra.mxu0 0.0
    %94 = vmatprep.subr.mxu0 0.0
    %95 = vmatpush1.msra.mxu0 0.0
    %96 = vmatprep.subr.mxu0 0.0
    %97 = vmatpush1.msra.mxu0 0.0
    %98 = vmatprep.subr.mxu0 0.0
    %99 = vmatpush1.msra.mxu0 0.0
    %100 = vmatprep.subr.mxu0 0.0
    %101 = vmatpush1.msra.mxu0 0.0
    %102 = vmatprep.subr.mxu0 0.0
    %103 = vmatpush1.msra.mxu0 0.0
    %104 = vmatprep.subr.mxu0 0.0
    %105 = vmatpush1.msra.mxu0 0.0
    %106 = vmatprep.subr.mxu0 0.0
    %107 = vmatpush1.msra.mxu0 0.0
    %108 = vmatprep.subr.mxu0 0.0
    %109 = vmatpush1.msra.mxu0 0.0
    %110 = vmatprep.subr.mxu0 0.0
    %111 = vmatpush1.msra.mxu0 0.0
    %112 = vmatprep.mubr.f32.mxu0 0.0
    %113 = vmatmul.mubr.f32.gmra.mrb[0].mxu0 %v31
    %v114 = vpop.f32.mrb[0].mxu0
    %v115 = vadd.f32 0.0, %v114
    %v116 = vpop.f32.mrb[0].mxu0
    %117 = vdwg.mxu0
    %v118 = vadd.f32 %v30, %v115
    %119 = vst [vmem:[#allocation2] sm:$0xff] %v118
    // Predicated region
    $region18: #{_fwd.1} parent=1 // pred_check
      %p120 = pneg %p25
    $region19: #{_fwd.1} parent=1 // pred_check_branch
      %122 = sbr.rel (%p120) target = $region21
    $region20: #{_fwd.1} parent=1 // pred_region
      %v123 = vld [vmem:[#allocation2] sm:$0xff]
      %v124 = vmax.f32 %v123, -10.0
      %v125 = vmin.f32 %v124, 10.0
      %v126 = vmul.f32 %v125, 0.5
      %v127 = vtanh.pop %v126
      %128 = vst [vmem:[%s2] sm:$0xff] %v127
    $region21: #{_fwd.1} parent=1 // pred_fallthru
      _
    // Predicated region
    $region22: #{_fwd.1} parent=1 // pred_check
      _
    $region23: #{_fwd.1} parent=1 // pred_check_branch
      %130 = sbr.rel (0) target = $region25
    $region24: #{_fwd.1} parent=1 // pred_region
      _
    $region25: #{_fwd.1} parent=1 // pred_fallthru
      _
    // Predicated region
    $region26: #{_fwd.1} parent=1 // pred_check
      _
    $region27: #{_fwd.1} parent=1 // pred_check_branch
      %132 = sbr.rel (0) target = $region29
    $region28: #{_fwd.1} parent=1 // pred_region
      _
    $region29: #{_fwd.1} parent=1 // pred_fallthru
      _
    %133 = vsyncpa [#allocation4], 1

</llo_original>
